<compile_context>
chip_gen: v6e
topology: v6e:2x2x1
jax: 0.10.0
libtpu: 0.0.40
codegen_flags: <defaults>
</compile_context>

<pallas_src>
import functools

import jax
import jax.numpy as jnp
from jax.experimental import pallas as pl
from jax.experimental.pallas import tpu as pltpu


LANE = 128  # TPU lane width; last-dim tiles should be 128-dense


def _round_up(v, m):
    return (v + m - 1) // m * m


def _pad2d(arr, rows, cols):
    r, c = arr.shape
    return jnp.pad(arr, ((0, rows - r), (0, cols - c)))


def _itemsize(dtype):
    return jnp.finfo(dtype).bits // 8


# ----------------------------- Pallas kernel --------------------------------
def gcn_layer_kernel(a_ref, x_ref, w_ref, b_ref, o_ref, acc_ref, *, activation):
    """One grid step of a GCN layer: acc[i] += Â[i,k] @ (X[k,:] @ W).
    bf16 MXU inputs, f32 accumulation; bias + activation in the finalize."""
    k = pl.program_id(1)

    @pl.when(k == 0)
    def _init():
        acc_ref[...] = jnp.zeros_like(acc_ref)

    # X_k @ W (bf16 x bf16 -> f32 acc), cast back to bf16 so the second
    # matmul also uses the bf16 MXU path.
    xw = jnp.dot(x_ref[...], w_ref[...], preferred_element_type=jnp.float32)
    acc_ref[...] += jnp.dot(a_ref[...], xw.astype(jnp.bfloat16),
                            preferred_element_type=jnp.float32)

    @pl.when(k == pl.num_programs(1) - 1)
    def _finalize():
        z = acc_ref[...] + b_ref[...].astype(jnp.float32)
        if activation == "relu":
            z = jnp.maximum(z, 0.0)
        else:  # sigmoid
            z = jax.nn.sigmoid(z)
        o_ref[...] = z.astype(o_ref.dtype)


def gcn_layer(a, x, w, b, *, activation, out_dtype, tm=128, tk=128):
    """act(Â @ (X @ W) + b) as a tiled pallas_call.
    a: (N, N) bf16, x: (N, Din) bf16, w: (Din, Dout) bf16, b: (1, Dout) f32.
    N must be a multiple of tm and tk; Din/Dout are lane-padded upstream."""
    n = a.shape[0]
    din = x.shape[1]
    dout = w.shape[1]
    assert n % tm == 0 and n % tk == 0
    grid = (n // tm, n // tk)

    flops = grid[0] * grid[1] * (2 * tk * din * dout + 2 * tm * tk * dout)
    transcendentals = n * dout if activation == "sigmoid" else 0
    bytes_accessed = (a.size * a.dtype.itemsize + x.size * x.dtype.itemsize
                      + w.size * w.dtype.itemsize + b.size * b.dtype.itemsize
                      + n * dout * _itemsize(out_dtype))

    kernel = functools.partial(gcn_layer_kernel, activation=activation)
    return pl.pallas_call(
        kernel,
        out_shape=jax.ShapeDtypeStruct((n, dout), out_dtype),
        grid_spec=pltpu.PrefetchScalarGridSpec(
            num_scalar_prefetch=0,
            grid=grid,
            in_specs=[
                pl.BlockSpec((tm, tk), lambda i, k: (i, k)),     # Â tile
                pl.BlockSpec((tk, din), lambda i, k: (k, 0)),    # X rows for k
                pl.BlockSpec((din, dout), lambda i, k: (0, 0)),  # W (resident)
                pl.BlockSpec((1, dout), lambda i, k: (0, 0)),    # bias (resident)
            ],
            out_specs=pl.BlockSpec((tm, dout), lambda i, k: (i, 0)),
            scratch_shapes=[pltpu.VMEM((tm, dout), jnp.float32)],
        ),
        compiler_params=pltpu.CompilerParams(
            dimension_semantics=("parallel", "arbitrary")),
        cost_estimate=pl.CostEstimate(flops=flops,
                                      transcendentals=transcendentals,
                                      bytes_accessed=bytes_accessed),
    )(a, x, w, b)


@jax.jit
def gcn_forward(a_norm, x, w1, b1, w2, b2):
    """sigmoid(Â relu(Â X W1 + b1) W2 + b2), lane/tile padded + bf16 MXU."""
    n = x.shape[0]
    din, dlayer = w1.shape
    dout = w2.shape[1]

    tm = tk = 128
    n_p = _round_up(n, max(tm, tk))
    din_p = _round_up(din, LANE)
    dlayer_p = _round_up(dlayer, LANE)
    dout_p = _round_up(dout, LANE)

    a_p = _pad2d(a_norm, n_p, n_p).astype(jnp.bfloat16)
    x_p = _pad2d(x, n_p, din_p).astype(jnp.bfloat16)
    w1_p = _pad2d(w1, din_p, dlayer_p).astype(jnp.bfloat16)
    w2_p = _pad2d(w2, dlayer_p, dout_p).astype(jnp.bfloat16)
    b1_p = _pad2d(b1, 1, dlayer_p).astype(jnp.float32)
    b2_p = _pad2d(b2, 1, dout_p).astype(jnp.float32)

    h = gcn_layer(a_p, x_p, w1_p, b1_p, activation="relu",
                  out_dtype=jnp.bfloat16, tm=tm, tk=tk)
    z = gcn_layer(a_p, h, w2_p, b2_p, activation="sigmoid",
                  out_dtype=jnp.float32, tm=tm, tk=tk)
    return z[:n, :dout]


# ------------------------- graph preprocessing (glue) -----------------------
def gcn_normalized_adjacency(edge_index, num_nodes):
    """Dense Â = D^-1/2 (A + I) D^-1/2, matching PyG GCNConv gcn_norm."""
    src, dst = edge_index[0], edge_index[1]
    loops = jnp.arange(num_nodes, dtype=edge_index.dtype)
    src = jnp.concatenate([src, loops])
    dst = jnp.concatenate([dst, loops])
    w = jnp.ones(src.shape[0], dtype=jnp.float32)

    deg = jnp.zeros((num_nodes,), jnp.float32).at[dst].add(w)
    deg_inv_sqrt = jnp.where(deg > 0, jax.lax.rsqrt(deg), 0.0)
    norm = deg_inv_sqrt[src] * deg_inv_sqrt[dst] * w

    # out[dst] += norm * x[src]  ->  A_hat[dst, src] = norm
    return jnp.zeros((num_nodes, num_nodes), jnp.float32).at[dst, src].add(norm)


def glorot(key, shape):
    fan_in, fan_out = shape[0], shape[1]
    limit = jnp.sqrt(6.0 / (fan_in + fan_out))
    return jax.random.uniform(key, shape, jnp.float32, -limit, limit)


# ------------------------------ references ----------------------------------
def _mm(a, b):
    return jnp.dot(a.astype(jnp.float32), b.astype(jnp.float32),
                   precision=jax.lax.Precision.HIGHEST)


def reference_forward_bf16(a_norm, x, w1, b1, w2, b2):
    """Mimics the kernel's bf16-input / f32-accumulate numerics."""
    a_b = a_norm.astype(jnp.bfloat16)
    x_b = x.astype(jnp.bfloat16)
    w1_b = w1.astype(jnp.bfloat16)
    w2_b = w2.astype(jnp.bfloat16)

    xw = _mm(x_b, w1_b).astype(jnp.bfloat16)
    h = jnp.maximum(_mm(a_b, xw) + b1, 0.0).astype(jnp.bfloat16)
    hw = _mm(h, w2_b).astype(jnp.bfloat16)
    return jax.nn.sigmoid(_mm(a_b, hw) + b2)


def reference_forward_f32(a_norm, x, w1, b1, w2, b2):
    h = jnp.maximum(_mm(a_norm, _mm(x, w1)) + b1, 0.0)
    return jax.nn.sigmoid(_mm(a_norm, _mm(h, w2)) + b2)


# ------------------------------------ main -----------------------------------
if __name__ == "__main__":
    # module defaults: dim_in=128, dim_layer=128, dim_out=1
    N = 128
    DIM_IN = 128
    DIM_LAYER = 128
    DIM_OUT = 1

    key = jax.random.PRNGKey(0)
    k_x, k_w1, k_b1, k_w2, k_b2 = jax.random.split(key, 5)

    x = jax.random.normal(k_x, (N, DIM_IN), jnp.float32)

    # deterministic undirected graph: ring + a few long chords (no dupes/loops)
    ring_src = jnp.arange(N, dtype=jnp.int32)
    ring_dst = (ring_src + 1) % N
    chord_src = jnp.arange(0, N // 2, 8, dtype=jnp.int32)
    chord_dst = chord_src + N // 2
    src = jnp.concatenate([ring_src, chord_src])
    dst = jnp.concatenate([ring_dst, chord_dst])
    edge_index = jnp.stack([jnp.concatenate([src, dst]),
                            jnp.concatenate([dst, src])])  # (2, E)

    # parameters (GCNConv-style glorot weights; small random biases to
    # exercise the bias path)
    w1 = glorot(k_w1, (DIM_IN, DIM_LAYER))
    b1 = 0.1 * jax.random.normal(k_b1, (1, DIM_LAYER), jnp.float32)
    w2 = glorot(k_w2, (DIM_LAYER, DIM_OUT))
    b2 = 0.1 * jax.random.normal(k_b2, (1, DIM_OUT), jnp.float32)

    a_norm = gcn_normalized_adjacency(edge_index, N)

    out = jax.block_until_ready(gcn_forward(a_norm, x, w1, b1, w2, b2))
    assert out.shape == (N, DIM_OUT)

    # tight check against a reference with matched bf16 quantization
    ref_b = reference_forward_bf16(a_norm, x, w1, b1, w2, b2)
    assert jnp.allclose(out, ref_b, atol=1e-3, rtol=1e-3), \
        float(jnp.max(jnp.abs(out - ref_b)))

    # loose check against the pure-f32 forward (bf16 input quantization error)
    ref_f = reference_forward_f32(a_norm, x, w1, b1, w2, b2)
    assert jnp.allclose(out, ref_f, atol=5e-2), \
        float(jnp.max(jnp.abs(out - ref_f)))

    print("KERNEL_OK")
</pallas_src>

<mosaic_0001>
module attributes {stable_mosaic.version = 11 : i64} {
  func.func @gcn_layer_kernel(%arg0: i32, %arg1: i32, %arg2: memref<128x128xbf16, #tpu.memory_space<vmem>>, %arg3: memref<128x128xbf16, #tpu.memory_space<vmem>>, %arg4: memref<128x128xbf16, #tpu.memory_space<vmem>>, %arg5: memref<1x128xf32, #tpu.memory_space<vmem>>, %arg6: memref<128x128xbf16, #tpu.memory_space<vmem>>, %arg7: memref<128x128xf32, #tpu.memory_space<vmem>>) attributes {dimension_semantics = [#tpu.dimension_semantics<parallel>, #tpu.dimension_semantics<arbitrary>], iteration_bounds = array<i64: 1, 1>, scalar_prefetch = 0 : i64, scratch_operands = 1 : i64, tpu.core_type = #tpu.core_type<tc>, window_params = [{transform_indices = @transform_0, window_bounds = array<i64: 128, 128>}, {transform_indices = @transform_1, window_bounds = array<i64: 128, 128>}, {pipeline_mode = #tpu.pipeline_mode<synchronous>, transform_indices = @transform_2, window_bounds = array<i64: 128, 128>}, {pipeline_mode = #tpu.pipeline_mode<synchronous>, transform_indices = @transform_3, window_bounds = array<i64: 1, 128>}, {transform_indices = @transform_4, window_bounds = array<i64: 128, 128>}]} {
    %c0_i32 = arith.constant 0 : i32
    %0 = arith.cmpi eq, %arg1, %c0_i32 : i32
    %1 = arith.extui %0 : i1 to i32
    %c0_i32_0 = arith.constant 0 : i32
    %2 = arith.cmpi ne, %1, %c0_i32_0 : i32
    scf.if %2 {
      %cst_13 = arith.constant 0.000000e+00 : f32
      %15 = vector.broadcast %cst_13 : f32 to vector<128x128xf32>
      %c0_14 = arith.constant 0 : index
      %c0_15 = arith.constant 0 : index
      %16 = vector.load %arg7[%c0_14, %c0_15] : memref<128x128xf32, #tpu.memory_space<vmem>>, vector<128x128xf32>
      tpu.vector_store %arg7[%c0_14, %c0_15], %15 {strides = array<i32>} : memref<128x128xf32, #tpu.memory_space<vmem>>, vector<128x128xf32>,
    } else {
    }
    %c0 = arith.constant 0 : index
    %c0_1 = arith.constant 0 : index
    %3 = vector.load %arg3[%c0, %c0_1] : memref<128x128xbf16, #tpu.memory_space<vmem>>, vector<128x128xbf16>
    %c0_2 = arith.constant 0 : index
    %c0_3 = arith.constant 0 : index
    %4 = vector.load %arg4[%c0_2, %c0_3] : memref<128x128xbf16, #tpu.memory_space<vmem>>, vector<128x128xbf16>
    %cst = arith.constant dense<0.000000e+00> : vector<128x128xf32>
    %5 = tpu.matmul %3, %4, %cst {dimension_numbers = #tpu.dot_dimension_numbers<[1], [0], [0], [1], [0, 0, 1, 1], [], []>} : vector<128x128xbf16>, vector<128x128xbf16>, vector<128x128xf32> -> vector<128x128xf32>
    %c0_4 = arith.constant 0 : index
    %c0_5 = arith.constant 0 : index
    %6 = vector.load %arg7[%c0_4, %c0_5] : memref<128x128xf32, #tpu.memory_space<vmem>>, vector<128x128xf32>
    %c0_6 = arith.constant 0 : index
    %c0_7 = arith.constant 0 : index
    %7 = vector.load %arg2[%c0_6, %c0_7] : memref<128x128xbf16, #tpu.memory_space<vmem>>, vector<128x128xbf16>
    %8 = arith.truncf %5 : vector<128x128xf32> to vector<128x128xbf16>
    %cst_8 = arith.constant dense<0.000000e+00> : vector<128x128xf32>
    %9 = tpu.matmul %7, %8, %cst_8 {dimension_numbers = #tpu.dot_dimension_numbers<[1], [0], [0], [1], [0, 0, 1, 1], [], []>} : vector<128x128xbf16>, vector<128x128xbf16>, vector<128x128xf32> -> vector<128x128xf32>
    %10 = arith.addf %6, %9 : vector<128x128xf32>
    %c0_9 = arith.constant 0 : index
    %c0_10 = arith.constant 0 : index
    %11 = vector.load %arg7[%c0_9, %c0_10] : memref<128x128xf32, #tpu.memory_space<vmem>>, vector<128x128xf32>
    tpu.vector_store %arg7[%c0_9, %c0_10], %10 {strides = array<i32>} : memref<128x128xf32, #tpu.memory_space<vmem>>, vector<128x128xf32>,
    %c0_i32_11 = arith.constant 0 : i32
    %12 = arith.cmpi eq, %arg1, %c0_i32_11 : i32
    %13 = arith.extui %12 : i1 to i32
    %c0_i32_12 = arith.constant 0 : i32
    %14 = arith.cmpi ne, %13, %c0_i32_12 : i32
    scf.if %14 {
      %c0_13 = arith.constant 0 : index
      %c0_14 = arith.constant 0 : index
      %15 = vector.load %arg7[%c0_13, %c0_14] : memref<128x128xf32, #tpu.memory_space<vmem>>, vector<128x128xf32>
      %c0_15 = arith.constant 0 : index
      %c0_16 = arith.constant 0 : index
      %16 = vector.load %arg5[%c0_15, %c0_16] : memref<1x128xf32, #tpu.memory_space<vmem>>, vector<1x128xf32>
      %17 = vector.broadcast %16 : vector<1x128xf32> to vector<128x128xf32>
      %18 = arith.addf %15, %17 : vector<128x128xf32>
      %cst_17 = arith.constant 0.000000e+00 : f32
      %19 = vector.broadcast %cst_17 : f32 to vector<128x128xf32>
      %20 = arith.maximumf %18, %19 : vector<128x128xf32>
      %21 = arith.truncf %20 : vector<128x128xf32> to vector<128x128xbf16>
      %c0_18 = arith.constant 0 : index
      %c0_19 = arith.constant 0 : index
      %22 = vector.load %arg6[%c0_18, %c0_19] : memref<128x128xbf16, #tpu.memory_space<vmem>>, vector<128x128xbf16>
      tpu.vector_store %arg6[%c0_18, %c0_19], %21 {strides = array<i32>} : memref<128x128xbf16, #tpu.memory_space<vmem>>, vector<128x128xbf16>,
    } else {
    }
    return
  }
  func.func @transform_0(%arg0: i32, %arg1: i32) -> (i32, i32) {
    %c0_i32 = arith.constant 0 : i32
    return %arg0, %arg1 : i32, i32
  }
  func.func @transform_1(%arg0: i32, %arg1: i32) -> (i32, i32) {
    %c0_i32 = arith.constant 0 : i32
    %c0_i32_0 = arith.constant 0 : i32
    return %arg1, %c0_i32 : i32, i32
  }
  func.func @transform_2(%arg0: i32, %arg1: i32) -> (i32, i32) {
    %c0_i32 = arith.constant 0 : i32
    %c0_i32_0 = arith.constant 0 : i32
    %c0_i32_1 = arith.constant 0 : i32
    return %c0_i32, %c0_i32_0 : i32, i32
  }
  func.func @transform_3(%arg0: i32, %arg1: i32) -> (i32, i32) {
    %c0_i32 = arith.constant 0 : i32
    %c0_i32_0 = arith.constant 0 : i32
    %c0_i32_1 = arith.constant 0 : i32
    return %c0_i32, %c0_i32_0 : i32, i32
  }
  func.func @transform_4(%arg0: i32, %arg1: i32) -> (i32, i32) {
    %c0_i32 = arith.constant 0 : i32
    %c0_i32_0 = arith.constant 0 : i32
    return %arg0, %c0_i32 : i32, i32
  }
}

module attributes {stable_mosaic.version = 11 : i64} {
  func.func @gcn_layer_kernel(%arg0: i32, %arg1: i32, %arg2: memref<128x128xbf16, #tpu.memory_space<vmem>>, %arg3: memref<128x128xbf16, #tpu.memory_space<vmem>>, %arg4: memref<128x128xbf16, #tpu.memory_space<vmem>>, %arg5: memref<1x128xf32, #tpu.memory_space<vmem>>, %arg6: memref<128x128xf32, #tpu.memory_space<vmem>>, %arg7: memref<128x128xf32, #tpu.memory_space<vmem>>) attributes {dimension_semantics = [#tpu.dimension_semantics<parallel>, #tpu.dimension_semantics<arbitrary>], iteration_bounds = array<i64: 1, 1>, scalar_prefetch = 0 : i64, scratch_operands = 1 : i64, tpu.core_type = #tpu.core_type<tc>, window_params = [{transform_indices = @transform_0, window_bounds = array<i64: 128, 128>}, {transform_indices = @transform_1, window_bounds = array<i64: 128, 128>}, {pipeline_mode = #tpu.pipeline_mode<synchronous>, transform_indices = @transform_2, window_bounds = array<i64: 128, 128>}, {pipeline_mode = #tpu.pipeline_mode<synchronous>, transform_indices = @transform_3, window_bounds = array<i64: 1, 128>}, {transform_indices = @transform_4, window_bounds = array<i64: 128, 128>}]} {
    %c0_i32 = arith.constant 0 : i32
    %0 = arith.cmpi eq, %arg1, %c0_i32 : i32
    %1 = arith.extui %0 : i1 to i32
    %c0_i32_0 = arith.constant 0 : i32
    %2 = arith.cmpi ne, %1, %c0_i32_0 : i32
    scf.if %2 {
      %cst_13 = arith.constant 0.000000e+00 : f32
      %15 = vector.broadcast %cst_13 : f32 to vector<128x128xf32>
      %c0_14 = arith.constant 0 : index
      %c0_15 = arith.constant 0 : index
      %16 = vector.load %arg7[%c0_14, %c0_15] : memref<128x128xf32, #tpu.memory_space<vmem>>, vector<128x128xf32>
      tpu.vector_store %arg7[%c0_14, %c0_15], %15 {strides = array<i32>} : memref<128x128xf32, #tpu.memory_space<vmem>>, vector<128x128xf32>,
    } else {
    }
    %c0 = arith.constant 0 : index
    %c0_1 = arith.constant 0 : index
    %3 = vector.load %arg3[%c0, %c0_1] : memref<128x128xbf16, #tpu.memory_space<vmem>>, vector<128x128xbf16>
    %c0_2 = arith.constant 0 : index
    %c0_3 = arith.constant 0 : index
    %4 = vector.load %arg4[%c0_2, %c0_3] : memref<128x128xbf16, #tpu.memory_space<vmem>>, vector<128x128xbf16>
    %cst = arith.constant dense<0.000000e+00> : vector<128x128xf32>
    %5 = tpu.matmul %3, %4, %cst {dimension_numbers = #tpu.dot_dimension_numbers<[1], [0], [0], [1], [0, 0, 1, 1], [], []>} : vector<128x128xbf16>, vector<128x128xbf16>, vector<128x128xf32> -> vector<128x128xf32>
    %c0_4 = arith.constant 0 : index
    %c0_5 = arith.constant 0 : index
    %6 = vector.load %arg7[%c0_4, %c0_5] : memref<128x128xf32, #tpu.memory_space<vmem>>, vector<128x128xf32>
    %c0_6 = arith.constant 0 : index
    %c0_7 = arith.constant 0 : index
    %7 = vector.load %arg2[%c0_6, %c0_7] : memref<128x128xbf16, #tpu.memory_space<vmem>>, vector<128x128xbf16>
    %8 = arith.truncf %5 : vector<128x128xf32> to vector<128x128xbf16>
    %cst_8 = arith.constant dense<0.000000e+00> : vector<128x128xf32>
    %9 = tpu.matmul %7, %8, %cst_8 {dimension_numbers = #tpu.dot_dimension_numbers<[1], [0], [0], [1], [0, 0, 1, 1], [], []>} : vector<128x128xbf16>, vector<128x128xbf16>, vector<128x128xf32> -> vector<128x128xf32>
    %10 = arith.addf %6, %9 : vector<128x128xf32>
    %c0_9 = arith.constant 0 : index
    %c0_10 = arith.constant 0 : index
    %11 = vector.load %arg7[%c0_9, %c0_10] : memref<128x128xf32, #tpu.memory_space<vmem>>, vector<128x128xf32>
    tpu.vector_store %arg7[%c0_9, %c0_10], %10 {strides = array<i32>} : memref<128x128xf32, #tpu.memory_space<vmem>>, vector<128x128xf32>,
    %c0_i32_11 = arith.constant 0 : i32
    %12 = arith.cmpi eq, %arg1, %c0_i32_11 : i32
    %13 = arith.extui %12 : i1 to i32
    %c0_i32_12 = arith.constant 0 : i32
    %14 = arith.cmpi ne, %13, %c0_i32_12 : i32
    scf.if %14 {
      %c0_13 = arith.constant 0 : index
      %c0_14 = arith.constant 0 : index
      %15 = vector.load %arg7[%c0_13, %c0_14] : memref<128x128xf32, #tpu.memory_space<vmem>>, vector<128x128xf32>
      %c0_15 = arith.constant 0 : index
      %c0_16 = arith.constant 0 : index
      %16 = vector.load %arg5[%c0_15, %c0_16] : memref<1x128xf32, #tpu.memory_space<vmem>>, vector<1x128xf32>
      %17 = vector.broadcast %16 : vector<1x128xf32> to vector<128x128xf32>
      %18 = arith.addf %15, %17 : vector<128x128xf32>
      %19 = arith.negf %18 : vector<128x128xf32>
      %20 = math.exp %19 : vector<128x128xf32>
      %cst_17 = arith.constant 1.000000e+00 : f32
      %21 = vector.broadcast %cst_17 : f32 to vector<128x128xf32>
      %22 = arith.addf %21, %20 : vector<128x128xf32>
      %23 = arith.divf %21, %22 : vector<128x128xf32>
      %c0_18 = arith.constant 0 : index
      %c0_19 = arith.constant 0 : index
      %24 = vector.load %arg6[%c0_18, %c0_19] : memref<128x128xf32, #tpu.memory_space<vmem>>, vector<128x128xf32>
      tpu.vector_store %arg6[%c0_18, %c0_19], %23 {strides = array<i32>} : memref<128x128xf32, #tpu.memory_space<vmem>>, vector<128x128xf32>,
    } else {
    }
    return
  }
  func.func @transform_0(%arg0: i32, %arg1: i32) -> (i32, i32) {
    %c0_i32 = arith.constant 0 : i32
    return %arg0, %arg1 : i32, i32
  }
  func.func @transform_1(%arg0: i32, %arg1: i32) -> (i32, i32) {
    %c0_i32 = arith.constant 0 : i32
    %c0_i32_0 = arith.constant 0 : i32
    return %arg1, %c0_i32 : i32, i32
  }
  func.func @transform_2(%arg0: i32, %arg1: i32) -> (i32, i32) {
    %c0_i32 = arith.constant 0 : i32
    %c0_i32_0 = arith.constant 0 : i32
    %c0_i32_1 = arith.constant 0 : i32
    return %c0_i32, %c0_i32_0 : i32, i32
  }
  func.func @transform_3(%arg0: i32, %arg1: i32) -> (i32, i32) {
    %c0_i32 = arith.constant 0 : i32
    %c0_i32_0 = arith.constant 0 : i32
    %c0_i32_1 = arith.constant 0 : i32
    return %c0_i32, %c0_i32_0 : i32, i32
  }
  func.func @transform_4(%arg0: i32, %arg1: i32) -> (i32, i32) {
    %c0_i32 = arith.constant 0 : i32
    %c0_i32_0 = arith.constant 0 : i32
    return %arg0, %c0_i32 : i32, i32
  }
}

</mosaic_0001>

<llo_original>
// kernel: gcn_forward.2
$region0: #{gcn_forward.2}
  #allocation0 [shape = 'u32[]', space=smem, size = 0x4, offset = 0x4, fixed_abs, tag = 'smem constant byte address 0x4 - core index']
  #allocation1 [shape = 'u32[144,128]{1,0:T(1,128)}', space=vmem, size = 0x12000, scoped, tag = 'internal scratch']
  #allocation2 [shape = 'f32[128,128]{1,0:T(8,128)}', space=vmem, size = 0x10000, scoped, tag = 'scratch operand']
  %s0 = inlined_call_operand.vmem [shape: bf16[128,128], index: 0, kind: input, shape index: {}]
  %s1 = inlined_call_operand.vmem [shape: bf16[128,128], index: 1, kind: input, shape index: {}]
  %s2 = inlined_call_operand.vmem [shape: bf16[128,128], index: 2, kind: input, shape index: {}]
  %s3 = inlined_call_operand.vmem [shape: f32[1,128], index: 3, kind: input, shape index: {}]
  %s4 = inlined_call_operand.vmem [shape: bf16[128,128], index: 4, kind: output, shape index: {}]
  %s5 = sld [smem:[#allocation0]]
  $region34: #{gcn_forward.2} parent=0
    _
  %s7 = ssub.s32 1, %s5
  %s8 = scalar_select 0, %s7, %s5
  // Predicated region
  $region2: #{gcn_forward.2} parent=0 // pred_check
    _
  $region3: #{gcn_forward.2} parent=0 // pred_check_branch
    %10 = sbr.rel (0) target = $region5
  $region4: #{gcn_forward.2} parent=0 // pred_region
    _
  $region5: #{gcn_forward.2} parent=0 // pred_fallthru
    _
  // Predicated region
  $region6: #{gcn_forward.2} parent=0 // pred_check
    _
  $region7: #{gcn_forward.2} parent=0 // pred_check_branch
    %12 = sbr.rel (0) target = $region9
  $region8: #{gcn_forward.2} parent=0 // pred_region
    _
  $region9: #{gcn_forward.2} parent=0 // pred_fallthru
    _
  // Predicated region
  $region10: #{gcn_forward.2} parent=0 // pred_check
    _
  $region11: #{gcn_forward.2} parent=0 // pred_check_branch
    %14 = sbr.rel (0) target = $region13
  $region12: #{gcn_forward.2} parent=0 // pred_region
    _
  $region13: #{gcn_forward.2} parent=0 // pred_fallthru
    _
  // Predicated region
  $region14: #{gcn_forward.2} parent=0 // pred_check
    _
  $region15: #{gcn_forward.2} parent=0 // pred_check_branch
    %16 = sbr.rel (0) target = $region17
  $region16: #{gcn_forward.2} parent=0 // pred_region
    _
  $region17: #{gcn_forward.2} parent=0 // pred_fallthru
    _
  %p18 = scmp.eq.s32.totalorder 0, 0
  // Predicated region
  $region18: #{gcn_forward.2} parent=0 // pred_check
    %p19 = pneg %p18
  $region19: #{gcn_forward.2} parent=0 // pred_check_branch
    %21 = sbr.rel (%p19) target = $region21
  $region20: #{gcn_forward.2} parent=0 // pred_region
    %22 = vst [vmem:[#allocation2] sm:$0xff] 0.0
    %23 = vst [vmem:[#allocation2 + $0x8] sm:$0xff] 0.0
    %24 = vst [vmem:[#allocation2 + $0x10] sm:$0xff] 0.0
    %25 = vst [vmem:[#allocation2 + $0x18] sm:$0xff] 0.0
    %26 = vst [vmem:[#allocation2 + $0x20] sm:$0xff] 0.0
    %27 = vst [vmem:[#allocation2 + $0x28] sm:$0xff] 0.0
    %28 = vst [vmem:[#allocation2 + $0x30] sm:$0xff] 0.0
    %29 = vst [vmem:[#allocation2 + $0x38] sm:$0xff] 0.0
    %30 = vst [vmem:[#allocation2 + $0x40] sm:$0xff] 0.0
    %31 = vst [vmem:[#allocation2 + $0x48] sm:$0xff] 0.0
    %32 = vst [vmem:[#allocation2 + $0x50] sm:$0xff] 0.0
    %33 = vst [vmem:[#allocation2 + $0x58] sm:$0xff] 0.0
    %34 = vst [vmem:[#allocation2 + $0x60] sm:$0xff] 0.0
    %35 = vst [vmem:[#allocation2 + $0x68] sm:$0xff] 0.0
    %36 = vst [vmem:[#allocation2 + $0x70] sm:$0xff] 0.0
    %37 = vst [vmem:[#allocation2 + $0x78] sm:$0xff] 0.0
  $region21: #{gcn_forward.2} parent=0 // pred_fallthru
    _
  %v38 = vld [vmem:[%s1] sm:$0xf]
  %v39 = vld [vmem:[%s1 + $0x4] sm:$0xf]
  %v40 = vld [vmem:[%s1 + $0x8] sm:$0xf]
  %v41 = vld [vmem:[%s1 + $0xc] sm:$0xf]
  %v42 = vld [vmem:[%s1 + $0x10] sm:$0xf]
  %v43 = vld [vmem:[%s1 + $0x14] sm:$0xf]
  %v44 = vld [vmem:[%s1 + $0x18] sm:$0xf]
  %v45 = vld [vmem:[%s1 + $0x1c] sm:$0xf]
  %v46 = vld [vmem:[%s1 + $0x20] sm:$0xf]
  %v47 = vld [vmem:[%s1 + $0x24] sm:$0xf]
  %v48 = vld [vmem:[%s1 + $0x28] sm:$0xf]
  %v49 = vld [vmem:[%s1 + $0x2c] sm:$0xf]
  %v50 = vld [vmem:[%s1 + $0x30] sm:$0xf]
  %v51 = vld [vmem:[%s1 + $0x34] sm:$0xf]
  %v52 = vld [vmem:[%s1 + $0x38] sm:$0xf]
  %v53 = vld [vmem:[%s1 + $0x3c] sm:$0xf]
  %v54 = vld [vmem:[%s2] sm:$0xf]
  %v55 = vld [vmem:[%s2 + $0x4] sm:$0xf]
  %v56 = vld [vmem:[%s2 + $0x8] sm:$0xf]
  %v57 = vld [vmem:[%s2 + $0xc] sm:$0xf]
  %v58 = vld [vmem:[%s2 + $0x10] sm:$0xf]
  %v59 = vld [vmem:[%s2 + $0x14] sm:$0xf]
  %v60 = vld [vmem:[%s2 + $0x18] sm:$0xf]
  %v61 = vld [vmem:[%s2 + $0x1c] sm:$0xf]
  %v62 = vld [vmem:[%s2 + $0x20] sm:$0xf]
  %v63 = vld [vmem:[%s2 + $0x24] sm:$0xf]
  %v64 = vld [vmem:[%s2 + $0x28] sm:$0xf]
  %v65 = vld [vmem:[%s2 + $0x2c] sm:$0xf]
  %v66 = vld [vmem:[%s2 + $0x30] sm:$0xf]
  %v67 = vld [vmem:[%s2 + $0x34] sm:$0xf]
  %v68 = vld [vmem:[%s2 + $0x38] sm:$0xf]
  %v69 = vld [vmem:[%s2 + $0x3c] sm:$0xf]
  %v86 = vunpack.c.l.b16 %v38
  %v87 = vunpack.c.l.b16 %v39
  %v88 = vunpack.c.l.b16 %v40
  %v89 = vunpack.c.l.b16 %v41
  %v90 = vunpack.c.l.b16 %v42
  %v91 = vunpack.c.l.b16 %v43
  %v92 = vunpack.c.l.b16 %v44
  %v93 = vunpack.c.l.b16 %v45
  %v94 = vunpack.c.l.b16 %v46
  %v95 = vunpack.c.l.b16 %v47
  %v96 = vunpack.c.l.b16 %v48
  %v97 = vunpack.c.l.b16 %v49
  %v98 = vunpack.c.l.b16 %v50
  %v99 = vunpack.c.l.b16 %v51
  %v100 = vunpack.c.l.b16 %v52
  %v101 = vunpack.c.l.b16 %v53
  %v102 = vpack.c.b16 %v87, %v86
  %v103 = vpack.c.b16 %v89, %v88
  %v104 = vpack.c.b16 %v91, %v90
  %v105 = vpack.c.b16 %v93, %v92
  %v106 = vpack.c.b16 %v95, %v94
  %v107 = vpack.c.b16 %v97, %v96
  %v108 = vpack.c.b16 %v99, %v98
  %v109 = vpack.c.b16 %v101, %v100
  %v134 = vunpack.c.l.b16 %v54
  %v135 = vunpack.c.l.b16 %v55
  %v136 = vunpack.c.l.b16 %v56
  %v137 = vunpack.c.l.b16 %v57
  %v138 = vunpack.c.l.b16 %v58
  %v139 = vunpack.c.l.b16 %v59
  %v140 = vunpack.c.l.b16 %v60
  %v141 = vunpack.c.l.b16 %v61
  %v142 = vunpack.c.l.b16 %v62
  %v143 = vunpack.c.l.b16 %v63
  %v144 = vunpack.c.l.b16 %v64
  %v145 = vunpack.c.l.b16 %v65
  %v146 = vunpack.c.l.b16 %v66
  %v147 = vunpack.c.l.b16 %v67
  %v148 = vunpack.c.l.b16 %v68
  %v149 = vunpack.c.l.b16 %v69
  %v150 = vpack.c.b16 %v135, %v134
  %v151 = vpack.c.b16 %v137, %v136
  %v152 = vpack.c.b16 %v139, %v138
  %v153 = vpack.c.b16 %v141, %v140
  %v154 = vpack.c.b16 %v143, %v142
  %v155 = vpack.c.b16 %v145, %v144
  %v156 = vpack.c.b16 %v147, %v146
  %v157 = vpack.c.b16 %v149, %v148
  %166 = vmatprep.subr.bf16.mxu0 0
  %167 = vmatpush1.bf16.msra.mxu0 %v157
  %168 = vmatprep.subr.bf16.mxu0 0
  %169 = vmatpush1.bf16.msra.mxu0 %v156
  %170 = vmatprep.subr.bf16.mxu0 0
  %171 = vmatpush1.bf16.msra.mxu0 %v155
  %172 = vmatprep.subr.bf16.mxu0 0
  %173 = vmatpush1.bf16.msra.mxu0 %v154
  %174 = vmatprep.subr.bf16.mxu0 0
  %175 = vmatpush1.bf16.msra.mxu0 %v153
  %176 = vmatprep.subr.bf16.mxu0 0
  %177 = vmatpush1.bf16.msra.mxu0 %v152
  %178 = vmatprep.subr.bf16.mxu0 0
  %179 = vmatpush1.bf16.msra.mxu0 %v151
  %180 = vmatprep.subr.bf16.mxu0 0
  %181 = vmatpush1.bf16.msra.mxu0 %v150
  %182 = vmatprep.subr.bf16.mxu0 0
  %183 = vmatpush2.bf16.msra.mxu0 0
  %184 = vmatprep.subr.bf16.mxu0 0
  %185 = vmatpush2.bf16.msra.mxu0 0
  %186 = vmatprep.subr.bf16.mxu0 0
  %187 = vmatpush2.bf16.msra.mxu0 0
  %188 = vmatprep.subr.bf16.mxu0 0
  %189 = vmatpush2.bf16.msra.mxu0 0
  %190 = vmatprep.subr.bf16.mxu0 0
  %191 = vmatpush2.bf16.msra.mxu0 0
  %192 = vmatprep.subr.bf16.mxu0 0
  %193 = vmatpush2.bf16.msra.mxu0 0
  %194 = vmatprep.subr.bf16.mxu0 0
  %195 = vmatpush2.bf16.msra.mxu0 0
  %196 = vmatprep.subr.bf16.mxu0 0
  %197 = vmatpush2.bf16.msra.mxu0 0
  %198 = vmatprep.mubr.bf16.mxu0 0
  %199 = vmatmul.mubr.bf16.gmra.mxu0 %v102
  %v200 = vpop.f32.mrf.mxu0
  %v201 = vadd.f32 0.0, %v200
  %v202 = vpop.f32.mrf.mxu0
  %v203 = vpop.f32.mrf.mxu0
  %v204 = vadd.f32 0.0, %v203
  %v205 = vpop.f32.mrf.mxu0
  %206 = vmatprep.mubr.bf16.mxu0 0
  %207 = vmatmul.mubr.bf16.gmra.mxu0 %v103
  %v208 = vpop.f32.mrf.mxu0
  %v209 = vadd.f32 0.0, %v208
  %v210 = vpop.f32.mrf.mxu0
  %v211 = vpop.f32.mrf.mxu0
  %v212 = vadd.f32 0.0, %v211
  %v213 = vpop.f32.mrf.mxu0
  %214 = vmatprep.mubr.bf16.mxu0 0
  %215 = vmatmul.mubr.bf16.gmra.mxu0 %v104
  %v216 = vpop.f32.mrf.mxu0
  %v217 = vadd.f32 0.0, %v216
  %v218 = vpop.f32.mrf.mxu0
  %v219 = vpop.f32.mrf.mxu0
  %v220 = vadd.f32 0.0, %v219
  %v221 = vpop.f32.mrf.mxu0
  %222 = vmatprep.mubr.bf16.mxu0 0
  %223 = vmatmul.mubr.bf16.gmra.mxu0 %v105
  %v224 = vpop.f32.mrf.mxu0
  %v225 = vadd.f32 0.0, %v224
  %v226 = vpop.f32.mrf.mxu0
  %v227 = vpop.f32.mrf.mxu0
  %v228 = vadd.f32 0.0, %v227
  %v229 = vpop.f32.mrf.mxu0
  %230 = vmatprep.mubr.bf16.mxu0 0
  %231 = vmatmul.mubr.bf16.gmra.mxu0 %v106
  %v232 = vpop.f32.mrf.mxu0
  %v233 = vadd.f32 0.0, %v232
  %v234 = vpop.f32.mrf.mxu0
  %v235 = vpop.f32.mrf.mxu0
  %v236 = vadd.f32 0.0, %v235
  %v237 = vpop.f32.mrf.mxu0
  %238 = vmatprep.mubr.bf16.mxu0 0
  %239 = vmatmul.mubr.bf16.gmra.mxu0 %v107
  %v240 = vpop.f32.mrf.mxu0
  %v241 = vadd.f32 0.0, %v240
  %v242 = vpop.f32.mrf.mxu0
  %v243 = vpop.f32.mrf.mxu0
  %v244 = vadd.f32 0.0, %v243
  %v245 = vpop.f32.mrf.mxu0
  %246 = vmatprep.mubr.bf16.mxu0 0
  %247 = vmatmul.mubr.bf16.gmra.mxu0 %v108
  %v248 = vpop.f32.mrf.mxu0
  %v249 = vadd.f32 0.0, %v248
  %v250 = vpop.f32.mrf.mxu0
  %v251 = vpop.f32.mrf.mxu0
  %v252 = vadd.f32 0.0, %v251
  %v253 = vpop.f32.mrf.mxu0
  %254 = vmatprep.mubr.bf16.mxu0 0
  %255 = vmatmul.mubr.bf16.gmra.mxu0 %v109
  %v256 = vpop.f32.mrf.mxu0
  %v257 = vadd.f32 0.0, %v256
  %v258 = vpop.f32.mrf.mxu0
  %v259 = vpop.f32.mrf.mxu0
  %v260 = vadd.f32 0.0, %v259
  %v261 = vpop.f32.mrf.mxu0
  %262 = vdwg.mxu0
  %v263 = vld [vmem:[#allocation2] sm:$0xff]
  %v264 = vld [vmem:[#allocation2 + $0x8] sm:$0xff]
  %v265 = vld [vmem:[#allocation2 + $0x10] sm:$0xff]
  %v266 = vld [vmem:[#allocation2 + $0x18] sm:$0xff]
  %v267 = vld [vmem:[#allocation2 + $0x20] sm:$0xff]
  %v268 = vld [vmem:[#allocation2 + $0x28] sm:$0xff]
  %v269 = vld [vmem:[#allocation2 + $0x30] sm:$0xff]
  %v270 = vld [vmem:[#allocation2 + $0x38] sm:$0xff]
  %v271 = vld [vmem:[#allocation2 + $0x40] sm:$0xff]
  %v272 = vld [vmem:[#allocation2 + $0x48] sm:$0xff]
  %v273 = vld [vmem:[#allocation2 + $0x50] sm:$0xff]
  %v274 = vld [vmem:[#allocation2 + $0x58] sm:$0xff]
  %v275 = vld [vmem:[#allocation2 + $0x60] sm:$0xff]
  %v276 = vld [vmem:[#allocation2 + $0x68] sm:$0xff]
  %v277 = vld [vmem:[#allocation2 + $0x70] sm:$0xff]
  %v278 = vld [vmem:[#allocation2 + $0x78] sm:$0xff]
  %v279 = vld [vmem:[%s0] sm:$0xf]
  %v280 = vld [vmem:[%s0 + $0x4] sm:$0xf]
  %v281 = vld [vmem:[%s0 + $0x8] sm:$0xf]
  %v282 = vld [vmem:[%s0 + $0xc] sm:$0xf]
  %v283 = vld [vmem:[%s0 + $0x10] sm:$0xf]
  %v284 = vld [vmem:[%s0 + $0x14] sm:$0xf]
  %v285 = vld [vmem:[%s0 + $0x18] sm:$0xf]
  %v286 = vld [vmem:[%s0 + $0x1c] sm:$0xf]
  %v287 = vld [vmem:[%s0 + $0x20] sm:$0xf]
  %v288 = vld [vmem:[%s0 + $0x24] sm:$0xf]
  %v289 = vld [vmem:[%s0 + $0x28] sm:$0xf]
  %v290 = vld [vmem:[%s0 + $0x2c] sm:$0xf]
  %v291 = vld [vmem:[%s0 + $0x30] sm:$0xf]
  %v292 = vld [vmem:[%s0 + $0x34] sm:$0xf]
  %v293 = vld [vmem:[%s0 + $0x38] sm:$0xf]
  %v294 = vld [vmem:[%s0 + $0x3c] sm:$0xf]
  %v295 = vpack.c.bf16 %v204, %v201
  %v296 = vpack.c.bf16 %v212, %v209
  %v297 = vpack.c.bf16 %v220, %v217
  %v298 = vpack.c.bf16 %v228, %v225
  %v299 = vpack.c.bf16 %v236, %v233
  %v300 = vpack.c.bf16 %v244, %v241
  %v301 = vpack.c.bf16 %v252, %v249
  %v302 = vpack.c.bf16 %v260, %v257
  %v319 = vunpack.c.l.b16 %v279
  %v320 = vunpack.c.l.b16 %v280
  %v321 = vunpack.c.l.b16 %v281
  %v322 = vunpack.c.l.b16 %v282
  %v323 = vunpack.c.l.b16 %v283
  %v324 = vunpack.c.l.b16 %v284
  %v325 = vunpack.c.l.b16 %v285
  %v326 = vunpack.c.l.b16 %v286
  %v327 = vunpack.c.l.b16 %v287
  %v328 = vunpack.c.l.b16 %v288
  %v329 = vunpack.c.l.b16 %v289
  %v330 = vunpack.c.l.b16 %v290
  %v331 = vunpack.c.l.b16 %v291
  %v332 = vunpack.c.l.b16 %v292
  %v333 = vunpack.c.l.b16 %v293
  %v334 = vunpack.c.l.b16 %v294
  %v335 = vpack.c.b16 %v320, %v319
  %v336 = vpack.c.b16 %v322, %v321
  %v337 = vpack.c.b16 %v324, %v323
  %v338 = vpack.c.b16 %v326, %v325
  %v339 = vpack.c.b16 %v328, %v327
  %v340 = vpack.c.b16 %v330, %v329
  %v341 = vpack.c.b16 %v332, %v331
  %v342 = vpack.c.b16 %v334, %v333
  %351 = vmatprep.subr.bf16.mxu0 0
  %352 = vmatpush1.bf16.msra.mxu0 %v302
  %353 = vmatprep.subr.bf16.mxu0 0
  %354 = vmatpush1.bf16.msra.mxu0 %v301
  %355 = vmatprep.subr.bf16.mxu0 0
  %356 = vmatpush1.bf16.msra.mxu0 %v300
  %357 = vmatprep.subr.bf16.mxu0 0
  %358 = vmatpush1.bf16.msra.mxu0 %v299
  %359 = vmatprep.subr.bf16.mxu0 0
  %360 = vmatpush1.bf16.msra.mxu0 %v298
  %361 = vmatprep.subr.bf16.mxu0 0
  %362 = vmatpush1.bf16.msra.mxu0 %v297
  %363 = vmatprep.subr.bf16.mxu0 0
  %364 = vmatpush1.bf16.msra.mxu0 %v296
  %365 = vmatprep.subr.bf16.mxu0 0
  %366 = vmatpush1.bf16.msra.mxu0 %v295
  %367 = vmatprep.subr.bf16.mxu0 0
  %368 = vmatpush2.bf16.msra.mxu0 0
  %369 = vmatprep.subr.bf16.mxu0 0
  %370 = vmatpush2.bf16.msra.mxu0 0
  %371 = vmatprep.subr.bf16.mxu0 0
  %372 = vmatpush2.bf16.msra.mxu0 0
  %373 = vmatprep.subr.bf16.mxu0 0
  %374 = vmatpush2.bf16.msra.mxu0 0
  %375 = vmatprep.subr.bf16.mxu0 0
  %376 = vmatpush2.bf16.msra.mxu0 0
  %377 = vmatprep.subr.bf16.mxu0 0
  %378 = vmatpush2.bf16.msra.mxu0 0
  %379 = vmatprep.subr.bf16.mxu0 0
  %380 = vmatpush2.bf16.msra.mxu0 0
  %381 = vmatprep.subr.bf16.mxu0 0
  %382 = vmatpush2.bf16.msra.mxu0 0
  %383 = vmatprep.mubr.bf16.mxu0 0
  %384 = vmatmul.mubr.bf16.gmra.mxu0 %v335
  %v385 = vpop.f32.mrf.mxu0
  %v386 = vadd.f32 0.0, %v385
  %v387 = vpop.f32.mrf.mxu0
  %v388 = vpop.f32.mrf.mxu0
  %v389 = vadd.f32 0.0, %v388
  %v390 = vpop.f32.mrf.mxu0
  %391 = vmatprep.mubr.bf16.mxu0 0
  %392 = vmatmul.mubr.bf16.gmra.mxu0 %v336
  %v393 = vpop.f32.mrf.mxu0
  %v394 = vadd.f32 0.0, %v393
  %v395 = vpop.f32.mrf.mxu0
  %v396 = vpop.f32.mrf.mxu0
  %v397 = vadd.f32 0.0, %v396
  %v398 = vpop.f32.mrf.mxu0
  %399 = vmatprep.mubr.bf16.mxu0 0
  %400 = vmatmul.mubr.bf16.gmra.mxu0 %v337
  %v401 = vpop.f32.mrf.mxu0
  %v402 = vadd.f32 0.0, %v401
  %v403 = vpop.f32.mrf.mxu0
  %v404 = vpop.f32.mrf.mxu0
  %v405 = vadd.f32 0.0, %v404
  %v406 = vpop.f32.mrf.mxu0
  %407 = vmatprep.mubr.bf16.mxu0 0
  %408 = vmatmul.mubr.bf16.gmra.mxu0 %v338
  %v409 = vpop.f32.mrf.mxu0
  %v410 = vadd.f32 0.0, %v409
  %v411 = vpop.f32.mrf.mxu0
  %v412 = vpop.f32.mrf.mxu0
  %v413 = vadd.f32 0.0, %v412
  %v414 = vpop.f32.mrf.mxu0
  %415 = vmatprep.mubr.bf16.mxu0 0
  %416 = vmatmul.mubr.bf16.gmra.mxu0 %v339
  %v417 = vpop.f32.mrf.mxu0
  %v418 = vadd.f32 0.0, %v417
  %v419 = vpop.f32.mrf.mxu0
  %v420 = vpop.f32.mrf.mxu0
  %v421 = vadd.f32 0.0, %v420
  %v422 = vpop.f32.mrf.mxu0
  %423 = vmatprep.mubr.bf16.mxu0 0
  %424 = vmatmul.mubr.bf16.gmra.mxu0 %v340
  %v425 = vpop.f32.mrf.mxu0
  %v426 = vadd.f32 0.0, %v425
  %v427 = vpop.f32.mrf.mxu0
  %v428 = vpop.f32.mrf.mxu0
  %v429 = vadd.f32 0.0, %v428
  %v430 = vpop.f32.mrf.mxu0
  %431 = vmatprep.mubr.bf16.mxu0 0
  %432 = vmatmul.mubr.bf16.gmra.mxu0 %v341
  %v433 = vpop.f32.mrf.mxu0
  %v434 = vadd.f32 0.0, %v433
  %v435 = vpop.f32.mrf.mxu0
  %v436 = vpop.f32.mrf.mxu0
  %v437 = vadd.f32 0.0, %v436
  %v438 = vpop.f32.mrf.mxu0
  %439 = vmatprep.mubr.bf16.mxu0 0
  %440 = vmatmul.mubr.bf16.gmra.mxu0 %v342
  %v441 = vpop.f32.mrf.mxu0
  %v442 = vadd.f32 0.0, %v441
  %v443 = vpop.f32.mrf.mxu0
  %v444 = vpop.f32.mrf.mxu0
  %v445 = vadd.f32 0.0, %v444
  %v446 = vpop.f32.mrf.mxu0
  %447 = vdwg.mxu0
  %v448 = vadd.f32 %v263, %v386
  %v449 = vadd.f32 %v264, %v389
  %v450 = vadd.f32 %v265, %v394
  %v451 = vadd.f32 %v266, %v397
  %v452 = vadd.f32 %v267, %v402
  %v453 = vadd.f32 %v268, %v405
  %v454 = vadd.f32 %v269, %v410
  %v455 = vadd.f32 %v270, %v413
  %v456 = vadd.f32 %v271, %v418
  %v457 = vadd.f32 %v272, %v421
  %v458 = vadd.f32 %v273, %v426
  %v459 = vadd.f32 %v274, %v429
  %v460 = vadd.f32 %v275, %v434
  %v461 = vadd.f32 %v276, %v437
  %v462 = vadd.f32 %v277, %v442
  %v463 = vadd.f32 %v278, %v445
  %464 = vst [vmem:[#allocation2] sm:$0xff] %v448
  %465 = vst [vmem:[#allocation2 + $0x8] sm:$0xff] %v449
  %466 = vst [vmem:[#allocation2 + $0x10] sm:$0xff] %v450
  %467 = vst [vmem:[#allocation2 + $0x18] sm:$0xff] %v451
  %468 = vst [vmem:[#allocation2 + $0x20] sm:$0xff] %v452
  %469 = vst [vmem:[#allocation2 + $0x28] sm:$0xff] %v453
  %470 = vst [vmem:[#allocation2 + $0x30] sm:$0xff] %v454
  %471 = vst [vmem:[#allocation2 + $0x38] sm:$0xff] %v455
  %472 = vst [vmem:[#allocation2 + $0x40] sm:$0xff] %v456
  %473 = vst [vmem:[#allocation2 + $0x48] sm:$0xff] %v457
  %474 = vst [vmem:[#allocation2 + $0x50] sm:$0xff] %v458
  %475 = vst [vmem:[#allocation2 + $0x58] sm:$0xff] %v459
  %476 = vst [vmem:[#allocation2 + $0x60] sm:$0xff] %v460
  %477 = vst [vmem:[#allocation2 + $0x68] sm:$0xff] %v461
  %478 = vst [vmem:[#allocation2 + $0x70] sm:$0xff] %v462
  %479 = vst [vmem:[#allocation2 + $0x78] sm:$0xff] %v463
  // Predicated region
  $region22: #{gcn_forward.2} parent=0 // pred_check
    %p480 = pneg %p18
  $region23: #{gcn_forward.2} parent=0 // pred_check_branch
    %482 = sbr.rel (%p480) target = $region25
  $region24: #{gcn_forward.2} parent=0 // pred_region
    %v483 = vld [vmem:[#allocation2] sm:$0xff]
    %v484 = vld [vmem:[#allocation2 + $0x8] sm:$0xff]
    %v485 = vld [vmem:[#allocation2 + $0x10] sm:$0xff]
    %v486 = vld [vmem:[#allocation2 + $0x18] sm:$0xff]
    %v487 = vld [vmem:[#allocation2 + $0x20] sm:$0xff]
    %v488 = vld [vmem:[#allocation2 + $0x28] sm:$0xff]
    %v489 = vld [vmem:[#allocation2 + $0x30] sm:$0xff]
    %v490 = vld [vmem:[#allocation2 + $0x38] sm:$0xff]
    %v491 = vld [vmem:[#allocation2 + $0x40] sm:$0xff]
    %v492 = vld [vmem:[#allocation2 + $0x48] sm:$0xff]
    %v493 = vld [vmem:[#allocation2 + $0x50] sm:$0xff]
    %v494 = vld [vmem:[#allocation2 + $0x58] sm:$0xff]
    %v495 = vld [vmem:[#allocation2 + $0x60] sm:$0xff]
    %v496 = vld [vmem:[#allocation2 + $0x68] sm:$0xff]
    %v497 = vld [vmem:[#allocation2 + $0x70] sm:$0xff]
    %v498 = vld [vmem:[#allocation2 + $0x78] sm:$0xff]
    %v499 = vld [vmem:[%s3] sm:$0x1]
    %v501 = vlaneseq
    %v502 = vshrl.u32 %v501, 7
    %v503 = vsub.s32 0, %v502
    %v504 = vrot.slane %v499, %v503
    %v506 = vadd.f32 %v483, %v504
    %v507 = vadd.f32 %v484, %v504
    %v508 = vadd.f32 %v485, %v504
    %v509 = vadd.f32 %v486, %v504
    %v510 = vadd.f32 %v487, %v504
    %v511 = vadd.f32 %v488, %v504
    %v512 = vadd.f32 %v489, %v504
    %v513 = vadd.f32 %v490, %v504
    %v514 = vadd.f32 %v491, %v504
    %v515 = vadd.f32 %v492, %v504
    %v516 = vadd.f32 %v493, %v504
    %v517 = vadd.f32 %v494, %v504
    %v518 = vadd.f32 %v495, %v504
    %v519 = vadd.f32 %v496, %v504
    %v520 = vadd.f32 %v497, %v504
    %v521 = vadd.f32 %v498, %v504
    %v522 = vmax.f32 %v506, 0.0
    %v523 = vmax.f32 %v507, 0.0
    %v524 = vmax.f32 %v508, 0.0
    %v525 = vmax.f32 %v509, 0.0
    %v526 = vmax.f32 %v510, 0.0
    %v527 = vmax.f32 %v511, 0.0
    %v528 = vmax.f32 %v512, 0.0
    %v529 = vmax.f32 %v513, 0.0
    %v530 = vmax.f32 %v514, 0.0
    %v531 = vmax.f32 %v515, 0.0
    %v532 = vmax.f32 %v516, 0.0
    %v533 = vmax.f32 %v517, 0.0
    %v534 = vmax.f32 %v518, 0.0
    %v535 = vmax.f32 %v519, 0.0
    %v536 = vmax.f32 %v520, 0.0
    %v537 = vmax.f32 %v521, 0.0
    %v538 = vpack.c.bf16 %v523, %v522
    %v539 = vpack.c.bf16 %v525, %v524
    %v540 = vpack.c.bf16 %v527, %v526
    %v541 = vpack.c.bf16 %v529, %v528
    %v542 = vpack.c.bf16 %v531, %v530
    %v543 = vpack.c.bf16 %v533, %v532
    %v544 = vpack.c.bf16 %v535, %v534
    %v545 = vpack.c.bf16 %v537, %v536
    %v554 = vunpack.c.l.b16 %v538
    %v555 = vunpack.c.h.b16 %v538
    %v556 = vunpack.c.l.b16 %v539
    %v557 = vunpack.c.h.b16 %v539
    %v558 = vunpack.c.l.b16 %v540
    %v559 = vunpack.c.h.b16 %v540
    %v560 = vunpack.c.l.b16 %v541
    %v561 = vunpack.c.h.b16 %v541
    %v562 = vunpack.c.l.b16 %v542
    %v563 = vunpack.c.h.b16 %v542
    %v564 = vunpack.c.l.b16 %v543
    %v565 = vunpack.c.h.b16 %v543
    %v566 = vunpack.c.l.b16 %v544
    %v567 = vunpack.c.h.b16 %v544
    %v568 = vunpack.c.l.b16 %v545
    %v569 = vunpack.c.h.b16 %v545
    %v570 = vpack.c.b16 %v554, %v554
    %v571 = vpack.c.b16 %v555, %v555
    %v572 = vpack.c.b16 %v556, %v556
    %v573 = vpack.c.b16 %v557, %v557
    %v574 = vpack.c.b16 %v558, %v558
    %v575 = vpack.c.b16 %v559, %v559
    %v576 = vpack.c.b16 %v560, %v560
    %v577 = vpack.c.b16 %v561, %v561
    %v578 = vpack.c.b16 %v562, %v562
    %v579 = vpack.c.b16 %v563, %v563
    %v580 = vpack.c.b16 %v564, %v564
    %v581 = vpack.c.b16 %v565, %v565
    %v582 = vpack.c.b16 %v566, %v566
    %v583 = vpack.c.b16 %v567, %v567
    %v584 = vpack.c.b16 %v568, %v568
    %v585 = vpack.c.b16 %v569, %v569
    %602 = vst [vmem:[%s4] sm:$0xf] %v570
    %603 = vst [vmem:[%s4 + $0x4] sm:$0xf] %v571
    %604 = vst [vmem:[%s4 + $0x8] sm:$0xf] %v572
    %605 = vst [vmem:[%s4 + $0xc] sm:$0xf] %v573
    %606 = vst [vmem:[%s4 + $0x10] sm:$0xf] %v574
    %607 = vst [vmem:[%s4 + $0x14] sm:$0xf] %v575
    %608 = vst [vmem:[%s4 + $0x18] sm:$0xf] %v576
    %609 = vst [vmem:[%s4 + $0x1c] sm:$0xf] %v577
    %610 = vst [vmem:[%s4 + $0x20] sm:$0xf] %v578
    %611 = vst [vmem:[%s4 + $0x24] sm:$0xf] %v579
    %612 = vst [vmem:[%s4 + $0x28] sm:$0xf] %v580
    %613 = vst [vmem:[%s4 + $0x2c] sm:$0xf] %v581
    %614 = vst [vmem:[%s4 + $0x30] sm:$0xf] %v582
    %615 = vst [vmem:[%s4 + $0x34] sm:$0xf] %v583
    %616 = vst [vmem:[%s4 + $0x38] sm:$0xf] %v584
    %617 = vst [vmem:[%s4 + $0x3c] sm:$0xf] %v585
  $region25: #{gcn_forward.2} parent=0 // pred_fallthru
    _
  // Predicated region
  $region26: #{gcn_forward.2} parent=0 // pred_check
    _
  $region27: #{gcn_forward.2} parent=0 // pred_check_branch
    %619 = sbr.rel (0) target = $region29
  $region28: #{gcn_forward.2} parent=0 // pred_region
    _
  $region29: #{gcn_forward.2} parent=0 // pred_fallthru
    _
  // Predicated region
  $region30: #{gcn_forward.2} parent=0 // pred_check
    _
  $region31: #{gcn_forward.2} parent=0 // pred_check_branch
    %621 = sbr.rel (0) target = $region33
  $region32: #{gcn_forward.2} parent=0 // pred_region
    _
  $region33: #{gcn_forward.2} parent=0 // pred_fallthru
    _

// kernel: gcn_forward.3
$region0: #{gcn_forward.3}
  #allocation0 [shape = 'u32[]', space=smem, size = 0x4, offset = 0x4, fixed_abs, tag = 'smem constant byte address 0x4 - core index']
  #allocation1 [shape = 'u32[144,128]{1,0:T(1,128)}', space=vmem, size = 0x12000, scoped, tag = 'internal scratch']
  #allocation2 [shape = 'f32[128,128]{1,0:T(8,128)}', space=vmem, size = 0x10000, scoped, tag = 'scratch operand']
  %s0 = inlined_call_operand.vmem [shape: bf16[128,128], index: 0, kind: input, shape index: {}]
  %s1 = inlined_call_operand.vmem [shape: bf16[128,128], index: 1, kind: input, shape index: {}]
  %s2 = inlined_call_operand.vmem [shape: bf16[128,128], index: 2, kind: input, shape index: {}]
  %s3 = inlined_call_operand.vmem [shape: f32[1,128], index: 3, kind: input, shape index: {}]
  %s4 = inlined_call_operand.vmem [shape: f32[128,128], index: 4, kind: output, shape index: {}]
  %s5 = sld [smem:[#allocation0]]
  $region34: #{gcn_forward.3} parent=0
    _
  %s7 = ssub.s32 1, %s5
  %s8 = scalar_select 0, %s7, %s5
  // Predicated region
  $region2: #{gcn_forward.3} parent=0 // pred_check
    _
  $region3: #{gcn_forward.3} parent=0 // pred_check_branch
    %10 = sbr.rel (0) target = $region5
  $region4: #{gcn_forward.3} parent=0 // pred_region
    _
  $region5: #{gcn_forward.3} parent=0 // pred_fallthru
    _
  // Predicated region
  $region6: #{gcn_forward.3} parent=0 // pred_check
    _
  $region7: #{gcn_forward.3} parent=0 // pred_check_branch
    %12 = sbr.rel (0) target = $region9
  $region8: #{gcn_forward.3} parent=0 // pred_region
    _
  $region9: #{gcn_forward.3} parent=0 // pred_fallthru
    _
  // Predicated region
  $region10: #{gcn_forward.3} parent=0 // pred_check
    _
  $region11: #{gcn_forward.3} parent=0 // pred_check_branch
    %14 = sbr.rel (0) target = $region13
  $region12: #{gcn_forward.3} parent=0 // pred_region
    _
  $region13: #{gcn_forward.3} parent=0 // pred_fallthru
    _
  // Predicated region
  $region14: #{gcn_forward.3} parent=0 // pred_check
    _
  $region15: #{gcn_forward.3} parent=0 // pred_check_branch
    %16 = sbr.rel (0) target = $region17
  $region16: #{gcn_forward.3} parent=0 // pred_region
    _
  $region17: #{gcn_forward.3} parent=0 // pred_fallthru
    _
  %p18 = scmp.eq.s32.totalorder 0, 0
  // Predicated region
  $region18: #{gcn_forward.3} parent=0 // pred_check
    %p19 = pneg %p18
  $region19: #{gcn_forward.3} parent=0 // pred_check_branch
    %21 = sbr.rel (%p19) target = $region21
  $region20: #{gcn_forward.3} parent=0 // pred_region
    %22 = vst [vmem:[#allocation2] sm:$0xff] 0.0
    %23 = vst [vmem:[#allocation2 + $0x8] sm:$0xff] 0.0
    %24 = vst [vmem:[#allocation2 + $0x10] sm:$0xff] 0.0
    %25 = vst [vmem:[#allocation2 + $0x18] sm:$0xff] 0.0
    %26 = vst [vmem:[#allocation2 + $0x20] sm:$0xff] 0.0
    %27 = vst [vmem:[#allocation2 + $0x28] sm:$0xff] 0.0
    %28 = vst [vmem:[#allocation2 + $0x30] sm:$0xff] 0.0
    %29 = vst [vmem:[#allocation2 + $0x38] sm:$0xff] 0.0
    %30 = vst [vmem:[#allocation2 + $0x40] sm:$0xff] 0.0
    %31 = vst [vmem:[#allocation2 + $0x48] sm:$0xff] 0.0
    %32 = vst [vmem:[#allocation2 + $0x50] sm:$0xff] 0.0
    %33 = vst [vmem:[#allocation2 + $0x58] sm:$0xff] 0.0
    %34 = vst [vmem:[#allocation2 + $0x60] sm:$0xff] 0.0
    %35 = vst [vmem:[#allocation2 + $0x68] sm:$0xff] 0.0
    %36 = vst [vmem:[#allocation2 + $0x70] sm:$0xff] 0.0
    %37 = vst [vmem:[#allocation2 + $0x78] sm:$0xff] 0.0
  $region21: #{gcn_forward.3} parent=0 // pred_fallthru
    _
  %v38 = vld [vmem:[%s1] sm:$0xf]
  %v39 = vld [vmem:[%s1 + $0x4] sm:$0xf]
  %v40 = vld [vmem:[%s1 + $0x8] sm:$0xf]
  %v41 = vld [vmem:[%s1 + $0xc] sm:$0xf]
  %v42 = vld [vmem:[%s1 + $0x10] sm:$0xf]
  %v43 = vld [vmem:[%s1 + $0x14] sm:$0xf]
  %v44 = vld [vmem:[%s1 + $0x18] sm:$0xf]
  %v45 = vld [vmem:[%s1 + $0x1c] sm:$0xf]
  %v46 = vld [vmem:[%s1 + $0x20] sm:$0xf]
  %v47 = vld [vmem:[%s1 + $0x24] sm:$0xf]
  %v48 = vld [vmem:[%s1 + $0x28] sm:$0xf]
  %v49 = vld [vmem:[%s1 + $0x2c] sm:$0xf]
  %v50 = vld [vmem:[%s1 + $0x30] sm:$0xf]
  %v51 = vld [vmem:[%s1 + $0x34] sm:$0xf]
  %v52 = vld [vmem:[%s1 + $0x38] sm:$0xf]
  %v53 = vld [vmem:[%s1 + $0x3c] sm:$0xf]
  %v54 = vld [vmem:[%s2] sm:$0xf]
  %v55 = vld [vmem:[%s2 + $0x4] sm:$0xf]
  %v56 = vld [vmem:[%s2 + $0x8] sm:$0xf]
  %v57 = vld [vmem:[%s2 + $0xc] sm:$0xf]
  %v58 = vld [vmem:[%s2 + $0x10] sm:$0xf]
  %v59 = vld [vmem:[%s2 + $0x14] sm:$0xf]
  %v60 = vld [vmem:[%s2 + $0x18] sm:$0xf]
  %v61 = vld [vmem:[%s2 + $0x1c] sm:$0xf]
  %v62 = vld [vmem:[%s2 + $0x20] sm:$0xf]
  %v63 = vld [vmem:[%s2 + $0x24] sm:$0xf]
  %v64 = vld [vmem:[%s2 + $0x28] sm:$0xf]
  %v65 = vld [vmem:[%s2 + $0x2c] sm:$0xf]
  %v66 = vld [vmem:[%s2 + $0x30] sm:$0xf]
  %v67 = vld [vmem:[%s2 + $0x34] sm:$0xf]
  %v68 = vld [vmem:[%s2 + $0x38] sm:$0xf]
  %v69 = vld [vmem:[%s2 + $0x3c] sm:$0xf]
  %v86 = vunpack.c.l.b16 %v38
  %v87 = vunpack.c.l.b16 %v39
  %v88 = vunpack.c.l.b16 %v40
  %v89 = vunpack.c.l.b16 %v41
  %v90 = vunpack.c.l.b16 %v42
  %v91 = vunpack.c.l.b16 %v43
  %v92 = vunpack.c.l.b16 %v44
  %v93 = vunpack.c.l.b16 %v45
  %v94 = vunpack.c.l.b16 %v46
  %v95 = vunpack.c.l.b16 %v47
  %v96 = vunpack.c.l.b16 %v48
  %v97 = vunpack.c.l.b16 %v49
  %v98 = vunpack.c.l.b16 %v50
  %v99 = vunpack.c.l.b16 %v51
  %v100 = vunpack.c.l.b16 %v52
  %v101 = vunpack.c.l.b16 %v53
  %v102 = vpack.c.b16 %v87, %v86
  %v103 = vpack.c.b16 %v89, %v88
  %v104 = vpack.c.b16 %v91, %v90
  %v105 = vpack.c.b16 %v93, %v92
  %v106 = vpack.c.b16 %v95, %v94
  %v107 = vpack.c.b16 %v97, %v96
  %v108 = vpack.c.b16 %v99, %v98
  %v109 = vpack.c.b16 %v101, %v100
  %v134 = vunpack.c.l.b16 %v54
  %v135 = vunpack.c.l.b16 %v55
  %v136 = vunpack.c.l.b16 %v56
  %v137 = vunpack.c.l.b16 %v57
  %v138 = vunpack.c.l.b16 %v58
  %v139 = vunpack.c.l.b16 %v59
  %v140 = vunpack.c.l.b16 %v60
  %v141 = vunpack.c.l.b16 %v61
  %v142 = vunpack.c.l.b16 %v62
  %v143 = vunpack.c.l.b16 %v63
  %v144 = vunpack.c.l.b16 %v64
  %v145 = vunpack.c.l.b16 %v65
  %v146 = vunpack.c.l.b16 %v66
  %v147 = vunpack.c.l.b16 %v67
  %v148 = vunpack.c.l.b16 %v68
  %v149 = vunpack.c.l.b16 %v69
  %v150 = vpack.c.b16 %v135, %v134
  %v151 = vpack.c.b16 %v137, %v136
  %v152 = vpack.c.b16 %v139, %v138
  %v153 = vpack.c.b16 %v141, %v140
  %v154 = vpack.c.b16 %v143, %v142
  %v155 = vpack.c.b16 %v145, %v144
  %v156 = vpack.c.b16 %v147, %v146
  %v157 = vpack.c.b16 %v149, %v148
  %166 = vmatprep.subr.bf16.mxu0 0
  %167 = vmatpush1.bf16.msra.mxu0 %v157
  %168 = vmatprep.subr.bf16.mxu0 0
  %169 = vmatpush1.bf16.msra.mxu0 %v156
  %170 = vmatprep.subr.bf16.mxu0 0
  %171 = vmatpush1.bf16.msra.mxu0 %v155
  %172 = vmatprep.subr.bf16.mxu0 0
  %173 = vmatpush1.bf16.msra.mxu0 %v154
  %174 = vmatprep.subr.bf16.mxu0 0
  %175 = vmatpush1.bf16.msra.mxu0 %v153
  %176 = vmatprep.subr.bf16.mxu0 0
  %177 = vmatpush1.bf16.msra.mxu0 %v152
  %178 = vmatprep.subr.bf16.mxu0 0
  %179 = vmatpush1.bf16.msra.mxu0 %v151
  %180 = vmatprep.subr.bf16.mxu0 0
  %181 = vmatpush1.bf16.msra.mxu0 %v150
  %182 = vmatprep.subr.bf16.mxu0 0
  %183 = vmatpush2.bf16.msra.mxu0 0
  %184 = vmatprep.subr.bf16.mxu0 0
  %185 = vmatpush2.bf16.msra.mxu0 0
  %186 = vmatprep.subr.bf16.mxu0 0
  %187 = vmatpush2.bf16.msra.mxu0 0
  %188 = vmatprep.subr.bf16.mxu0 0
  %189 = vmatpush2.bf16.msra.mxu0 0
  %190 = vmatprep.subr.bf16.mxu0 0
  %191 = vmatpush2.bf16.msra.mxu0 0
  %192 = vmatprep.subr.bf16.mxu0 0
  %193 = vmatpush2.bf16.msra.mxu0 0
  %194 = vmatprep.subr.bf16.mxu0 0
  %195 = vmatpush2.bf16.msra.mxu0 0
  %196 = vmatprep.subr.bf16.mxu0 0
  %197 = vmatpush2.bf16.msra.mxu0 0
  %198 = vmatprep.mubr.bf16.mxu0 0
  %199 = vmatmul.mubr.bf16.gmra.mxu0 %v102
  %v200 = vpop.f32.mrf.mxu0
  %v201 = vadd.f32 0.0, %v200
  %v202 = vpop.f32.mrf.mxu0
  %v203 = vpop.f32.mrf.mxu0
  %v204 = vadd.f32 0.0, %v203
  %v205 = vpop.f32.mrf.mxu0
  %206 = vmatprep.mubr.bf16.mxu0 0
  %207 = vmatmul.mubr.bf16.gmra.mxu0 %v103
  %v208 = vpop.f32.mrf.mxu0
  %v209 = vadd.f32 0.0, %v208
  %v210 = vpop.f32.mrf.mxu0
  %v211 = vpop.f32.mrf.mxu0
  %v212 = vadd.f32 0.0, %v211
  %v213 = vpop.f32.mrf.mxu0
  %214 = vmatprep.mubr.bf16.mxu0 0
  %215 = vmatmul.mubr.bf16.gmra.mxu0 %v104
  %v216 = vpop.f32.mrf.mxu0
  %v217 = vadd.f32 0.0, %v216
  %v218 = vpop.f32.mrf.mxu0
  %v219 = vpop.f32.mrf.mxu0
  %v220 = vadd.f32 0.0, %v219
  %v221 = vpop.f32.mrf.mxu0
  %222 = vmatprep.mubr.bf16.mxu0 0
  %223 = vmatmul.mubr.bf16.gmra.mxu0 %v105
  %v224 = vpop.f32.mrf.mxu0
  %v225 = vadd.f32 0.0, %v224
  %v226 = vpop.f32.mrf.mxu0
  %v227 = vpop.f32.mrf.mxu0
  %v228 = vadd.f32 0.0, %v227
  %v229 = vpop.f32.mrf.mxu0
  %230 = vmatprep.mubr.bf16.mxu0 0
  %231 = vmatmul.mubr.bf16.gmra.mxu0 %v106
  %v232 = vpop.f32.mrf.mxu0
  %v233 = vadd.f32 0.0, %v232
  %v234 = vpop.f32.mrf.mxu0
  %v235 = vpop.f32.mrf.mxu0
  %v236 = vadd.f32 0.0, %v235
  %v237 = vpop.f32.mrf.mxu0
  %238 = vmatprep.mubr.bf16.mxu0 0
  %239 = vmatmul.mubr.bf16.gmra.mxu0 %v107
  %v240 = vpop.f32.mrf.mxu0
  %v241 = vadd.f32 0.0, %v240
  %v242 = vpop.f32.mrf.mxu0
  %v243 = vpop.f32.mrf.mxu0
  %v244 = vadd.f32 0.0, %v243
  %v245 = vpop.f32.mrf.mxu0
  %246 = vmatprep.mubr.bf16.mxu0 0
  %247 = vmatmul.mubr.bf16.gmra.mxu0 %v108
  %v248 = vpop.f32.mrf.mxu0
  %v249 = vadd.f32 0.0, %v248
  %v250 = vpop.f32.mrf.mxu0
  %v251 = vpop.f32.mrf.mxu0
  %v252 = vadd.f32 0.0, %v251
  %v253 = vpop.f32.mrf.mxu0
  %254 = vmatprep.mubr.bf16.mxu0 0
  %255 = vmatmul.mubr.bf16.gmra.mxu0 %v109
  %v256 = vpop.f32.mrf.mxu0
  %v257 = vadd.f32 0.0, %v256
  %v258 = vpop.f32.mrf.mxu0
  %v259 = vpop.f32.mrf.mxu0
  %v260 = vadd.f32 0.0, %v259
  %v261 = vpop.f32.mrf.mxu0
  %262 = vdwg.mxu0
  %v263 = vld [vmem:[#allocation2] sm:$0xff]
  %v264 = vld [vmem:[#allocation2 + $0x8] sm:$0xff]
  %v265 = vld [vmem:[#allocation2 + $0x10] sm:$0xff]
  %v266 = vld [vmem:[#allocation2 + $0x18] sm:$0xff]
  %v267 = vld [vmem:[#allocation2 + $0x20] sm:$0xff]
  %v268 = vld [vmem:[#allocation2 + $0x28] sm:$0xff]
  %v269 = vld [vmem:[#allocation2 + $0x30] sm:$0xff]
  %v270 = vld [vmem:[#allocation2 + $0x38] sm:$0xff]
  %v271 = vld [vmem:[#allocation2 + $0x40] sm:$0xff]
  %v272 = vld [vmem:[#allocation2 + $0x48] sm:$0xff]
  %v273 = vld [vmem:[#allocation2 + $0x50] sm:$0xff]
  %v274 = vld [vmem:[#allocation2 + $0x58] sm:$0xff]
  %v275 = vld [vmem:[#allocation2 + $0x60] sm:$0xff]
  %v276 = vld [vmem:[#allocation2 + $0x68] sm:$0xff]
  %v277 = vld [vmem:[#allocation2 + $0x70] sm:$0xff]
  %v278 = vld [vmem:[#allocation2 + $0x78] sm:$0xff]
  %v279 = vld [vmem:[%s0] sm:$0xf]
  %v280 = vld [vmem:[%s0 + $0x4] sm:$0xf]
  %v281 = vld [vmem:[%s0 + $0x8] sm:$0xf]
  %v282 = vld [vmem:[%s0 + $0xc] sm:$0xf]
  %v283 = vld [vmem:[%s0 + $0x10] sm:$0xf]
  %v284 = vld [vmem:[%s0 + $0x14] sm:$0xf]
  %v285 = vld [vmem:[%s0 + $0x18] sm:$0xf]
  %v286 = vld [vmem:[%s0 + $0x1c] sm:$0xf]
  %v287 = vld [vmem:[%s0 + $0x20] sm:$0xf]
  %v288 = vld [vmem:[%s0 + $0x24] sm:$0xf]
  %v289 = vld [vmem:[%s0 + $0x28] sm:$0xf]
  %v290 = vld [vmem:[%s0 + $0x2c] sm:$0xf]
  %v291 = vld [vmem:[%s0 + $0x30] sm:$0xf]
  %v292 = vld [vmem:[%s0 + $0x34] sm:$0xf]
  %v293 = vld [vmem:[%s0 + $0x38] sm:$0xf]
  %v294 = vld [vmem:[%s0 + $0x3c] sm:$0xf]
  %v295 = vpack.c.bf16 %v204, %v201
  %v296 = vpack.c.bf16 %v212, %v209
  %v297 = vpack.c.bf16 %v220, %v217
  %v298 = vpack.c.bf16 %v228, %v225
  %v299 = vpack.c.bf16 %v236, %v233
  %v300 = vpack.c.bf16 %v244, %v241
  %v301 = vpack.c.bf16 %v252, %v249
  %v302 = vpack.c.bf16 %v260, %v257
  %v319 = vunpack.c.l.b16 %v279
  %v320 = vunpack.c.l.b16 %v280
  %v321 = vunpack.c.l.b16 %v281
  %v322 = vunpack.c.l.b16 %v282
  %v323 = vunpack.c.l.b16 %v283
  %v324 = vunpack.c.l.b16 %v284
  %v325 = vunpack.c.l.b16 %v285
  %v326 = vunpack.c.l.b16 %v286
  %v327 = vunpack.c.l.b16 %v287
  %v328 = vunpack.c.l.b16 %v288
  %v329 = vunpack.c.l.b16 %v289
  %v330 = vunpack.c.l.b16 %v290
  %v331 = vunpack.c.l.b16 %v291
  %v332 = vunpack.c.l.b16 %v292
  %v333 = vunpack.c.l.b16 %v293
  %v334 = vunpack.c.l.b16 %v294
  %v335 = vpack.c.b16 %v320, %v319
  %v336 = vpack.c.b16 %v322, %v321
  %v337 = vpack.c.b16 %v324, %v323
  %v338 = vpack.c.b16 %v326, %v325
  %v339 = vpack.c.b16 %v328, %v327
  %v340 = vpack.c.b16 %v330, %v329
  %v341 = vpack.c.b16 %v332, %v331
  %v342 = vpack.c.b16 %v334, %v333
  %351 = vmatprep.subr.bf16.mxu0 0
  %352 = vmatpush1.bf16.msra.mxu0 %v302
  %353 = vmatprep.subr.bf16.mxu0 0
  %354 = vmatpush1.bf16.msra.mxu0 %v301
  %355 = vmatprep.subr.bf16.mxu0 0
  %356 = vmatpush1.bf16.msra.mxu0 %v300
  %357 = vmatprep.subr.bf16.mxu0 0
  %358 = vmatpush1.bf16.msra.mxu0 %v299
  %359 = vmatprep.subr.bf16.mxu0 0
  %360 = vmatpush1.bf16.msra.mxu0 %v298
  %361 = vmatprep.subr.bf16.mxu0 0
  %362 = vmatpush1.bf16.msra.mxu0 %v297
  %363 = vmatprep.subr.bf16.mxu0 0
  %364 = vmatpush1.bf16.msra.mxu0 %v296
  %365 = vmatprep.subr.bf16.mxu0 0
  %366 = vmatpush1.bf16.msra.mxu0 %v295
  %367 = vmatprep.subr.bf16.mxu0 0
  %368 = vmatpush2.bf16.msra.mxu0 0
  %369 = vmatprep.subr.bf16.mxu0 0
  %370 = vmatpush2.bf16.msra.mxu0 0
  %371 = vmatprep.subr.bf16.mxu0 0
  %372 = vmatpush2.bf16.msra.mxu0 0
  %373 = vmatprep.subr.bf16.mxu0 0
  %374 = vmatpush2.bf16.msra.mxu0 0
  %375 = vmatprep.subr.bf16.mxu0 0
  %376 = vmatpush2.bf16.msra.mxu0 0
  %377 = vmatprep.subr.bf16.mxu0 0
  %378 = vmatpush2.bf16.msra.mxu0 0
  %379 = vmatprep.subr.bf16.mxu0 0
  %380 = vmatpush2.bf16.msra.mxu0 0
  %381 = vmatprep.subr.bf16.mxu0 0
  %382 = vmatpush2.bf16.msra.mxu0 0
  %383 = vmatprep.mubr.bf16.mxu0 0
  %384 = vmatmul.mubr.bf16.gmra.mxu0 %v335
  %v385 = vpop.f32.mrf.mxu0
  %v386 = vadd.f32 0.0, %v385
  %v387 = vpop.f32.mrf.mxu0
  %v388 = vpop.f32.mrf.mxu0
  %v389 = vadd.f32 0.0, %v388
  %v390 = vpop.f32.mrf.mxu0
  %391 = vmatprep.mubr.bf16.mxu0 0
  %392 = vmatmul.mubr.bf16.gmra.mxu0 %v336
  %v393 = vpop.f32.mrf.mxu0
  %v394 = vadd.f32 0.0, %v393
  %v395 = vpop.f32.mrf.mxu0
  %v396 = vpop.f32.mrf.mxu0
  %v397 = vadd.f32 0.0, %v396
  %v398 = vpop.f32.mrf.mxu0
  %399 = vmatprep.mubr.bf16.mxu0 0
  %400 = vmatmul.mubr.bf16.gmra.mxu0 %v337
  %v401 = vpop.f32.mrf.mxu0
  %v402 = vadd.f32 0.0, %v401
  %v403 = vpop.f32.mrf.mxu0
  %v404 = vpop.f32.mrf.mxu0
  %v405 = vadd.f32 0.0, %v404
  %v406 = vpop.f32.mrf.mxu0
  %407 = vmatprep.mubr.bf16.mxu0 0
  %408 = vmatmul.mubr.bf16.gmra.mxu0 %v338
  %v409 = vpop.f32.mrf.mxu0
  %v410 = vadd.f32 0.0, %v409
  %v411 = vpop.f32.mrf.mxu0
  %v412 = vpop.f32.mrf.mxu0
  %v413 = vadd.f32 0.0, %v412
  %v414 = vpop.f32.mrf.mxu0
  %415 = vmatprep.mubr.bf16.mxu0 0
  %416 = vmatmul.mubr.bf16.gmra.mxu0 %v339
  %v417 = vpop.f32.mrf.mxu0
  %v418 = vadd.f32 0.0, %v417
  %v419 = vpop.f32.mrf.mxu0
  %v420 = vpop.f32.mrf.mxu0
  %v421 = vadd.f32 0.0, %v420
  %v422 = vpop.f32.mrf.mxu0
  %423 = vmatprep.mubr.bf16.mxu0 0
  %424 = vmatmul.mubr.bf16.gmra.mxu0 %v340
  %v425 = vpop.f32.mrf.mxu0
  %v426 = vadd.f32 0.0, %v425
  %v427 = vpop.f32.mrf.mxu0
  %v428 = vpop.f32.mrf.mxu0
  %v429 = vadd.f32 0.0, %v428
  %v430 = vpop.f32.mrf.mxu0
  %431 = vmatprep.mubr.bf16.mxu0 0
  %432 = vmatmul.mubr.bf16.gmra.mxu0 %v341
  %v433 = vpop.f32.mrf.mxu0
  %v434 = vadd.f32 0.0, %v433
  %v435 = vpop.f32.mrf.mxu0
  %v436 = vpop.f32.mrf.mxu0
  %v437 = vadd.f32 0.0, %v436
  %v438 = vpop.f32.mrf.mxu0
  %439 = vmatprep.mubr.bf16.mxu0 0
  %440 = vmatmul.mubr.bf16.gmra.mxu0 %v342
  %v441 = vpop.f32.mrf.mxu0
  %v442 = vadd.f32 0.0, %v441
  %v443 = vpop.f32.mrf.mxu0
  %v444 = vpop.f32.mrf.mxu0
  %v445 = vadd.f32 0.0, %v444
  %v446 = vpop.f32.mrf.mxu0
  %447 = vdwg.mxu0
  %v448 = vadd.f32 %v263, %v386
  %v449 = vadd.f32 %v264, %v389
  %v450 = vadd.f32 %v265, %v394
  %v451 = vadd.f32 %v266, %v397
  %v452 = vadd.f32 %v267, %v402
  %v453 = vadd.f32 %v268, %v405
  %v454 = vadd.f32 %v269, %v410
  %v455 = vadd.f32 %v270, %v413
  %v456 = vadd.f32 %v271, %v418
  %v457 = vadd.f32 %v272, %v421
  %v458 = vadd.f32 %v273, %v426
  %v459 = vadd.f32 %v274, %v429
  %v460 = vadd.f32 %v275, %v434
  %v461 = vadd.f32 %v276, %v437
  %v462 = vadd.f32 %v277, %v442
  %v463 = vadd.f32 %v278, %v445
  %464 = vst [vmem:[#allocation2] sm:$0xff] %v448
  %465 = vst [vmem:[#allocation2 + $0x8] sm:$0xff] %v449
  %466 = vst [vmem:[#allocation2 + $0x10] sm:$0xff] %v450
  %467 = vst [vmem:[#allocation2 + $0x18] sm:$0xff] %v451
  %468 = vst [vmem:[#allocation2 + $0x20] sm:$0xff] %v452
  %469 = vst [vmem:[#allocation2 + $0x28] sm:$0xff] %v453
  %470 = vst [vmem:[#allocation2 + $0x30] sm:$0xff] %v454
  %471 = vst [vmem:[#allocation2 + $0x38] sm:$0xff] %v455
  %472 = vst [vmem:[#allocation2 + $0x40] sm:$0xff] %v456
  %473 = vst [vmem:[#allocation2 + $0x48] sm:$0xff] %v457
  %474 = vst [vmem:[#allocation2 + $0x50] sm:$0xff] %v458
  %475 = vst [vmem:[#allocation2 + $0x58] sm:$0xff] %v459
  %476 = vst [vmem:[#allocation2 + $0x60] sm:$0xff] %v460
  %477 = vst [vmem:[#allocation2 + $0x68] sm:$0xff] %v461
  %478 = vst [vmem:[#allocation2 + $0x70] sm:$0xff] %v462
  %479 = vst [vmem:[#allocation2 + $0x78] sm:$0xff] %v463
  // Predicated region
  $region22: #{gcn_forward.3} parent=0 // pred_check
    %p480 = pneg %p18
  $region23: #{gcn_forward.3} parent=0 // pred_check_branch
    %482 = sbr.rel (%p480) target = $region25
  $region24: #{gcn_forward.3} parent=0 // pred_region
    %v483 = vld [vmem:[#allocation2] sm:$0xff]
    %v484 = vld [vmem:[#allocation2 + $0x8] sm:$0xff]
    %v485 = vld [vmem:[#allocation2 + $0x10] sm:$0xff]
    %v486 = vld [vmem:[#allocation2 + $0x18] sm:$0xff]
    %v487 = vld [vmem:[#allocation2 + $0x20] sm:$0xff]
    %v488 = vld [vmem:[#allocation2 + $0x28] sm:$0xff]
    %v489 = vld [vmem:[#allocation2 + $0x30] sm:$0xff]
    %v490 = vld [vmem:[#allocation2 + $0x38] sm:$0xff]
    %v491 = vld [vmem:[#allocation2 + $0x40] sm:$0xff]
    %v492 = vld [vmem:[#allocation2 + $0x48] sm:$0xff]
    %v493 = vld [vmem:[#allocation2 + $0x50] sm:$0xff]
    %v494 = vld [vmem:[#allocation2 + $0x58] sm:$0xff]
    %v495 = vld [vmem:[#allocation2 + $0x60] sm:$0xff]
    %v496 = vld [vmem:[#allocation2 + $0x68] sm:$0xff]
    %v497 = vld [vmem:[#allocation2 + $0x70] sm:$0xff]
    %v498 = vld [vmem:[#allocation2 + $0x78] sm:$0xff]
    %v499 = vld [vmem:[%s3] sm:$0x1]
    %v501 = vlaneseq
    %v502 = vshrl.u32 %v501, 7
    %v503 = vsub.s32 0, %v502
    %v504 = vrot.slane %v499, %v503
    %v506 = vadd.f32 %v483, %v504
    %v507 = vadd.f32 %v484, %v504
    %v508 = vadd.f32 %v485, %v504
    %v509 = vadd.f32 %v486, %v504
    %v510 = vadd.f32 %v487, %v504
    %v511 = vadd.f32 %v488, %v504
    %v512 = vadd.f32 %v489, %v504
    %v513 = vadd.f32 %v490, %v504
    %v514 = vadd.f32 %v491, %v504
    %v515 = vadd.f32 %v492, %v504
    %v516 = vadd.f32 %v493, %v504
    %v517 = vadd.f32 %v494, %v504
    %v518 = vadd.f32 %v495, %v504
    %v519 = vadd.f32 %v496, %v504
    %v520 = vadd.f32 %v497, %v504
    %v521 = vadd.f32 %v498, %v504
    %v522 = vxor.u32 %v506, 2147483648
    %v523 = vxor.u32 %v507, 2147483648
    %v524 = vxor.u32 %v508, 2147483648
    %v525 = vxor.u32 %v509, 2147483648
    %v526 = vxor.u32 %v510, 2147483648
    %v527 = vxor.u32 %v511, 2147483648
    %v528 = vxor.u32 %v512, 2147483648
    %v529 = vxor.u32 %v513, 2147483648
    %v530 = vxor.u32 %v514, 2147483648
    %v531 = vxor.u32 %v515, 2147483648
    %v532 = vxor.u32 %v516, 2147483648
    %v533 = vxor.u32 %v517, 2147483648
    %v534 = vxor.u32 %v518, 2147483648
    %v535 = vxor.u32 %v519, 2147483648
    %v536 = vxor.u32 %v520, 2147483648
    %v537 = vxor.u32 %v521, 2147483648
    %v538 = vmul.f32 %v522, 1.442695
    %v539 = vpow.pop %v538
    %v540 = vmul.f32 %v523, 1.442695
    %v541 = vpow.pop %v540
    %v542 = vmul.f32 %v524, 1.442695
    %v543 = vpow.pop %v542
    %v544 = vmul.f32 %v525, 1.442695
    %v545 = vpow.pop %v544
    %v546 = vmul.f32 %v526, 1.442695
    %v547 = vpow.pop %v546
    %v548 = vmul.f32 %v527, 1.442695
    %v549 = vpow.pop %v548
    %v550 = vmul.f32 %v528, 1.442695
    %v551 = vpow.pop %v550
    %v552 = vmul.f32 %v529, 1.442695
    %v553 = vpow.pop %v552
    %v554 = vmul.f32 %v530, 1.442695
    %v555 = vpow.pop %v554
    %v556 = vmul.f32 %v531, 1.442695
    %v557 = vpow.pop %v556
    %v558 = vmul.f32 %v532, 1.442695
    %v559 = vpow.pop %v558
    %v560 = vmul.f32 %v533, 1.442695
    %v561 = vpow.pop %v560
    %v562 = vmul.f32 %v534, 1.442695
    %v563 = vpow.pop %v562
    %v564 = vmul.f32 %v535, 1.442695
    %v565 = vpow.pop %v564
    %v566 = vmul.f32 %v536, 1.442695
    %v567 = vpow.pop %v566
    %v568 = vmul.f32 %v537, 1.442695
    %v569 = vpow.pop %v568
    %v570 = vadd.f32 %v539, 1.0
    %v571 = vadd.f32 %v541, 1.0
    %v572 = vadd.f32 %v543, 1.0
    %v573 = vadd.f32 %v545, 1.0
    %v574 = vadd.f32 %v547, 1.0
    %v575 = vadd.f32 %v549, 1.0
    %v576 = vadd.f32 %v551, 1.0
    %v577 = vadd.f32 %v553, 1.0
    %v578 = vadd.f32 %v555, 1.0
    %v579 = vadd.f32 %v557, 1.0
    %v580 = vadd.f32 %v559, 1.0
    %v581 = vadd.f32 %v561, 1.0
    %v582 = vadd.f32 %v563, 1.0
    %v583 = vadd.f32 %v565, 1.0
    %v584 = vadd.f32 %v567, 1.0
    %v585 = vadd.f32 %v569, 1.0
    %v586 = vrcp.pop %v570
    %v587 = vmul.f32 1.0, %v586
    %v588 = vrcp.pop %v571
    %v589 = vmul.f32 1.0, %v588
    %v590 = vrcp.pop %v572
    %v591 = vmul.f32 1.0, %v590
    %v592 = vrcp.pop %v573
    %v593 = vmul.f32 1.0, %v592
    %v594 = vrcp.pop %v574
    %v595 = vmul.f32 1.0, %v594
    %v596 = vrcp.pop %v575
    %v597 = vmul.f32 1.0, %v596
    %v598 = vrcp.pop %v576
    %v599 = vmul.f32 1.0, %v598
    %v600 = vrcp.pop %v577
    %v601 = vmul.f32 1.0, %v600
    %v602 = vrcp.pop %v578
    %v603 = vmul.f32 1.0, %v602
    %v604 = vrcp.pop %v579
    %v605 = vmul.f32 1.0, %v604
    %v606 = vrcp.pop %v580
    %v607 = vmul.f32 1.0, %v606
    %v608 = vrcp.pop %v581
    %v609 = vmul.f32 1.0, %v608
    %v610 = vrcp.pop %v582
    %v611 = vmul.f32 1.0, %v610
    %v612 = vrcp.pop %v583
    %v613 = vmul.f32 1.0, %v612
    %v614 = vrcp.pop %v584
    %v615 = vmul.f32 1.0, %v614
    %v616 = vrcp.pop %v585
    %v617 = vmul.f32 1.0, %v616
    %618 = vst [vmem:[%s4] sm:$0xff] %v587
    %619 = vst [vmem:[%s4 + $0x8] sm:$0xff] %v589
    %620 = vst [vmem:[%s4 + $0x10] sm:$0xff] %v591
    %621 = vst [vmem:[%s4 + $0x18] sm:$0xff] %v593
    %622 = vst [vmem:[%s4 + $0x20] sm:$0xff] %v595
    %623 = vst [vmem:[%s4 + $0x28] sm:$0xff] %v597
    %624 = vst [vmem:[%s4 + $0x30] sm:$0xff] %v599
    %625 = vst [vmem:[%s4 + $0x38] sm:$0xff] %v601
    %626 = vst [vmem:[%s4 + $0x40] sm:$0xff] %v603
    %627 = vst [vmem:[%s4 + $0x48] sm:$0xff] %v605
    %628 = vst [vmem:[%s4 + $0x50] sm:$0xff] %v607
    %629 = vst [vmem:[%s4 + $0x58] sm:$0xff] %v609
    %630 = vst [vmem:[%s4 + $0x60] sm:$0xff] %v611
    %631 = vst [vmem:[%s4 + $0x68] sm:$0xff] %v613
    %632 = vst [vmem:[%s4 + $0x70] sm:$0xff] %v615
    %633 = vst [vmem:[%s4 + $0x78] sm:$0xff] %v617
  $region25: #{gcn_forward.3} parent=0 // pred_fallthru
    _
  // Predicated region
  $region26: #{gcn_forward.3} parent=0 // pred_check
    _
  $region27: #{gcn_forward.3} parent=0 // pred_check_branch
    %635 = sbr.rel (0) target = $region29
  $region28: #{gcn_forward.3} parent=0 // pred_region
    _
  $region29: #{gcn_forward.3} parent=0 // pred_fallthru
    _
  // Predicated region
  $region30: #{gcn_forward.3} parent=0 // pred_check
    _
  $region31: #{gcn_forward.3} parent=0 // pred_check_branch
    %637 = sbr.rel (0) target = $region33
  $region32: #{gcn_forward.3} parent=0 // pred_region
    _
  $region33: #{gcn_forward.3} parent=0 // pred_fallthru
    _

</llo_original>
